<compile_context>
chip_gen: v7x
topology: tpu7x:2x2x1
jax: 0.10.0
libtpu: 0.0.40
codegen_flags: <defaults>
</compile_context>

<pallas_src>
import functools

import jax
import jax.numpy as jnp
from jax.experimental import pallas as pl
from jax.experimental.pallas import tpu as pltpu


def _round_up(n, m):
    return ((n + m - 1) // m) * m


def _fm_kernel(x_ref, o_ref, *, num_fields, emb_dim):
    # x_ref: (TILE_B, num_fields * emb_dim) block (batch on sublanes).
    # o_ref: (1, TILE_B) block (batch on lanes -> lane-dense store).
    x0 = x_ref[:, 0:emb_dim].astype(jnp.float32)
    s = x0            # running sum over fields,            (TILE_B, E) f32
    q = x0 * x0       # running sum of squares over fields, (TILE_B, E) f32
    for f in range(1, num_fields):
        xf = x_ref[:, f * emb_dim:(f + 1) * emb_dim].astype(jnp.float32)
        s = s + xf
        q = q + xf * xf
    # 0.5 * sum_e( (sum_f x)^2 - sum_f x^2 )
    cross = 0.5 * jnp.sum(s * s - q, axis=1)                 # (TILE_B,)
    o_ref[0, :] = cross


def _pick_tile_b(batch, row_bytes):
    target_block = 1 << 20      # ~1 MiB input block (Pallas double-buffers it)
    max_block = 4 << 20         # hard cap: stays comfortable in v7x's 64 MiB VMEM
    tile = max(1, target_block // row_bytes)
    tile = max(128, (tile // 128) * 128)   # multiple of 128: lane-dense output width
    if tile * row_bytes > max_block:
        # Very wide rows: shrink the tile (multiple of 8 sublanes).
        tile = max(8, ((max_block // row_bytes) // 8) * 8)
        tile = min(tile, _round_up(batch, 8))
    else:
        tile = min(tile, _round_up(batch, 128))
    return int(tile)


def base_fm(x, tile_b=None):
    """x: (batch, field, embedding) -> (batch, 1) float32."""
    B, F, E = x.shape
    FE = F * E
    x2d = x.reshape(B, FE)                               # free, row-major

    row_bytes = FE * x2d.dtype.itemsize
    if tile_b is None:
        tile_b = _pick_tile_b(B, row_bytes)

    b_pad = _round_up(B, tile_b)
    if b_pad != B:
        # Zero rows contribute exactly zero to the cross term; trimmed below.
        x2d = jnp.pad(x2d, ((0, b_pad - B), (0, 0)))
    num_tiles = b_pad // tile_b

    block_bytes = tile_b * row_bytes
    vmem_limit = int(min(48 << 20, max(16 << 20, 8 * block_bytes)))

    kernel = functools.partial(_fm_kernel, num_fields=F, emb_dim=E)

    out2d = pl.pallas_call(
        kernel,
        out_shape=jax.ShapeDtypeStruct((num_tiles, tile_b), jnp.float32),
        grid=(num_tiles,),
        in_specs=[pl.BlockSpec((tile_b, FE), lambda i: (i, 0))],
        out_specs=pl.BlockSpec((1, tile_b), lambda i: (i, 0)),
        compiler_params=pltpu.CompilerParams(
            dimension_semantics=("parallel",),
            vmem_limit_bytes=vmem_limit,
        ),
    )(x2d)

    return out2d.reshape(-1)[:B].reshape(B, 1)


def _reference(x):
    x = x.astype(jnp.float32)
    square_of_sum = jnp.sum(x, axis=1, keepdims=True) ** 2
    sum_of_square = jnp.sum(x * x, axis=1, keepdims=True)
    cross = square_of_sum - sum_of_square
    return 0.5 * jnp.sum(cross, axis=2)


if __name__ == "__main__":
    # Primary small shape matching the module's (batch, field, embedding) input.
    key = jax.random.PRNGKey(0)
    batch, field, emb = 2, 4, 32
    x = jax.random.normal(key, (batch, field, emb), dtype=jnp.float32)

    out = base_fm(x)
    jax.block_until_ready(out)
    ref = _reference(x)
    assert out.shape == (batch, 1), out.shape
    assert jnp.allclose(out, ref, atol=1e-4, rtol=1e-4), (out, ref)

    # Multi-tile grid + ragged batch + non-128-aligned embedding path.
    x2 = jax.random.normal(jax.random.PRNGKey(0), (300, 5, 24), dtype=jnp.float32)
    out2 = base_fm(x2, tile_b=128)
    jax.block_until_ready(out2)
    ref2 = _reference(x2)
    assert out2.shape == (300, 1), out2.shape
    assert jnp.allclose(out2, ref2, atol=1e-3, rtol=1e-3)

    print("KERNEL_OK")
</pallas_src>

<mosaic_0001>
module attributes {stable_mosaic.version = 11 : i64} {
  func.func @_fm_kernel(%arg0: i32, %arg1: memref<128x128xf32, #tpu.memory_space<vmem>>, %arg2: memref<1x128xf32, #tpu.memory_space<vmem>>) attributes {dimension_semantics = [#tpu.dimension_semantics<parallel>], iteration_bounds = array<i64: 1>, scalar_prefetch = 0 : i64, scratch_operands = 0 : i64, tpu.core_type = #tpu.core_type<tc>, window_params = [{transform_indices = @transform_0, window_bounds = array<i64: 128, 128>}, {transform_indices = @transform_1, window_bounds = array<i64: 1, 128>}]} {
    %c0 = arith.constant 0 : index
    %c0_0 = arith.constant 0 : index
    %0 = vector.load %arg1[%c0, %c0_0] : memref<128x128xf32, #tpu.memory_space<vmem>>, vector<128x32xf32>
    %1 = arith.mulf %0, %0 : vector<128x32xf32>
    %c0_1 = arith.constant 0 : index
    %c32 = arith.constant 32 : index
    %2 = vector.load %arg1[%c0_1, %c32] : memref<128x128xf32, #tpu.memory_space<vmem>>, vector<128x32xf32>
    %3 = arith.addf %0, %2 : vector<128x32xf32>
    %4 = arith.mulf %2, %2 : vector<128x32xf32>
    %5 = arith.addf %1, %4 : vector<128x32xf32>
    %c0_2 = arith.constant 0 : index
    %c64 = arith.constant 64 : index
    %6 = vector.load %arg1[%c0_2, %c64] : memref<128x128xf32, #tpu.memory_space<vmem>>, vector<128x32xf32>
    %7 = arith.addf %3, %6 : vector<128x32xf32>
    %8 = arith.mulf %6, %6 : vector<128x32xf32>
    %9 = arith.addf %5, %8 : vector<128x32xf32>
    %c0_3 = arith.constant 0 : index
    %c96 = arith.constant 96 : index
    %10 = vector.load %arg1[%c0_3, %c96] : memref<128x128xf32, #tpu.memory_space<vmem>>, vector<128x32xf32>
    %11 = arith.addf %7, %10 : vector<128x32xf32>
    %12 = arith.mulf %10, %10 : vector<128x32xf32>
    %13 = arith.addf %9, %12 : vector<128x32xf32>
    %14 = arith.mulf %11, %11 : vector<128x32xf32>
    %15 = arith.subf %14, %13 : vector<128x32xf32>
    %cst = arith.constant dense<0.000000e+00> : vector<128xf32>
    %16 = vector.multi_reduction <add>, %15, %cst [1] : vector<128x32xf32> to vector<128xf32>
    %cst_4 = arith.constant 5.000000e-01 : f32
    %17 = vector.broadcast %cst_4 : f32 to vector<128xf32>
    %18 = arith.mulf %17, %16 : vector<128xf32>
    %c0_5 = arith.constant 0 : index
    %c0_6 = arith.constant 0 : index
    %19 = vector.load %arg2[%c0_5, %c0_6] : memref<1x128xf32, #tpu.memory_space<vmem>>, vector<1x128xf32>
    %20 = vector.shape_cast %19 : vector<1x128xf32> to vector<128xf32>
    %21 = vector.shape_cast %18 : vector<128xf32> to vector<1x128xf32>
    tpu.vector_store %arg2[%c0_5, %c0_6], %21 {strides = array<i32>} : memref<1x128xf32, #tpu.memory_space<vmem>>, vector<1x128xf32>,
    return
  }
  func.func @transform_0(%arg0: i32) -> (i32, i32) {
    %c0_i32 = arith.constant 0 : i32
    %c0_i32_0 = arith.constant 0 : i32
    return %arg0, %c0_i32 : i32, i32
  }
  func.func @transform_1(%arg0: i32) -> (i32, i32) {
    %c0_i32 = arith.constant 0 : i32
    %c0_i32_0 = arith.constant 0 : i32
    return %arg0, %c0_i32 : i32, i32
  }
}

</mosaic_0001>

<llo_original>
// kernel: tpu_custom_call.1
$region0: #{tpu_custom_call.1}
  #allocation0 [shape = 'u32[]', space=smem, size = 0x4, offset = 0x4, fixed_abs, tag = 'smem constant byte address 0x4 - core index']
  #allocation1 [shape = 'u32[144,128]{1,0:T(1,128)}', space=vmem, size = 0x12000, scoped, tag = 'internal scratch']
  %s0 = inlined_call_operand.hbm [shape: f32[128,128], index: 0, kind: input, shape index: {}]
  %s1 = inlined_call_operand.hbm [shape: f32[1,128], index: 1, kind: output, shape index: {}]
  %s2 = sld [smem:[#allocation0]]
  $region18: #{tpu_custom_call.1} parent=0
    _
  %s4 = ssub.s32 1, %s2
  %s5 = scalar_select 0, %s4, %s2
  $region1: #{tpu_custom_call.1} parent=0
    #allocation2 [shape = 'u8[65536]{0}', space=vmem, size = 0x10000, scoped, tag = 'input window, operand 0, single buffered']
    #allocation3 [shape = 's32[1]{0}', space=sflag, size = 0x4, scoped, tag = 'scoped memory for tpu_custom_call.1']
    #allocation4 [shape = 's32[1]{0}', space=sflag, size = 0x4, scoped, tag = 'scoped memory for tpu_custom_call.1']
    #allocation5 [shape = 'u8[512]{0}', space=vmem, size = 0x400, scoped, tag = 'output window, operand 0, single buffered']
    %6 = vsyncpa [#allocation3], 0
    %7 = vsyncpa [#allocation4], 0
    // Predicated region
    $region2: #{tpu_custom_call.1} parent=1 // pred_check
      _
    $region3: #{tpu_custom_call.1} parent=1 // pred_check_branch
      %9 = sbr.rel (0) target = $region5
    $region4: #{tpu_custom_call.1} parent=1 // pred_region
      %s11 = ssub.s32 2048, 2048
      %12 = vsyncadd [#allocation3], %s11
      %s13 = sshll.u32 [#allocation2], 4
      %s14 = int_to_ptr.vmem [resolvable:$true] %s13
      %19 = dma.hbm_to_vmem [thread:$0]  %s0, 2048, %s14, [#allocation3], 128, 128, 8
    $region5: #{tpu_custom_call.1} parent=1 // pred_fallthru
      _
    // Predicated region
    $region6: #{tpu_custom_call.1} parent=1 // pred_check
      _
    $region7: #{tpu_custom_call.1} parent=1 // pred_check_branch
      %21 = sbr.rel (0) target = $region9
    $region8: #{tpu_custom_call.1} parent=1 // pred_region
      %22 = dma.done [#allocation3], 2048
    $region9: #{tpu_custom_call.1} parent=1 // pred_fallthru
      _
    %v23 = vld [vmem:[#allocation2] sm:$0xff]
    %v24 = vld [vmem:[#allocation2 + $0x8] sm:$0xff]
    %v25 = vld [vmem:[#allocation2 + $0x10] sm:$0xff]
    %v26 = vld [vmem:[#allocation2 + $0x18] sm:$0xff]
    %v27 = vld [vmem:[#allocation2 + $0x20] sm:$0xff]
    %v28 = vld [vmem:[#allocation2 + $0x28] sm:$0xff]
    %v29 = vld [vmem:[#allocation2 + $0x30] sm:$0xff]
    %v30 = vld [vmem:[#allocation2 + $0x38] sm:$0xff]
    %v31 = vld [vmem:[#allocation2 + $0x40] sm:$0xff]
    %v32 = vld [vmem:[#allocation2 + $0x48] sm:$0xff]
    %v33 = vld [vmem:[#allocation2 + $0x50] sm:$0xff]
    %v34 = vld [vmem:[#allocation2 + $0x58] sm:$0xff]
    %v35 = vld [vmem:[#allocation2 + $0x60] sm:$0xff]
    %v36 = vld [vmem:[#allocation2 + $0x68] sm:$0xff]
    %v37 = vld [vmem:[#allocation2 + $0x70] sm:$0xff]
    %v38 = vld [vmem:[#allocation2 + $0x78] sm:$0xff]
    %v39 = vmul.f32 %v23, %v23
    %v40 = vmul.f32 %v24, %v24
    %v41 = vmul.f32 %v25, %v25
    %v42 = vmul.f32 %v26, %v26
    %v43 = vmul.f32 %v27, %v27
    %v44 = vmul.f32 %v28, %v28
    %v45 = vmul.f32 %v29, %v29
    %v46 = vmul.f32 %v30, %v30
    %v47 = vmul.f32 %v31, %v31
    %v48 = vmul.f32 %v32, %v32
    %v49 = vmul.f32 %v33, %v33
    %v50 = vmul.f32 %v34, %v34
    %v51 = vmul.f32 %v35, %v35
    %v52 = vmul.f32 %v36, %v36
    %v53 = vmul.f32 %v37, %v37
    %v54 = vmul.f32 %v38, %v38
    %71 = vrot.lane.b32.xlu0 %v23, 96
    %v72 = vpop.permute.xlu0 %71
    %73 = vrot.lane.b32.xlu0 %v24, 96
    %v74 = vpop.permute.xlu0 %73
    %75 = vrot.lane.b32.xlu0 %v25, 96
    %v76 = vpop.permute.xlu0 %75
    %77 = vrot.lane.b32.xlu0 %v26, 96
    %v78 = vpop.permute.xlu0 %77
    %79 = vrot.lane.b32.xlu0 %v27, 96
    %v80 = vpop.permute.xlu0 %79
    %81 = vrot.lane.b32.xlu0 %v28, 96
    %v82 = vpop.permute.xlu0 %81
    %83 = vrot.lane.b32.xlu0 %v29, 96
    %v84 = vpop.permute.xlu0 %83
    %85 = vrot.lane.b32.xlu0 %v30, 96
    %v86 = vpop.permute.xlu0 %85
    %87 = vrot.lane.b32.xlu0 %v31, 96
    %v88 = vpop.permute.xlu0 %87
    %89 = vrot.lane.b32.xlu0 %v32, 96
    %v90 = vpop.permute.xlu0 %89
    %91 = vrot.lane.b32.xlu0 %v33, 96
    %v92 = vpop.permute.xlu0 %91
    %93 = vrot.lane.b32.xlu0 %v34, 96
    %v94 = vpop.permute.xlu0 %93
    %95 = vrot.lane.b32.xlu0 %v35, 96
    %v96 = vpop.permute.xlu0 %95
    %97 = vrot.lane.b32.xlu0 %v36, 96
    %v98 = vpop.permute.xlu0 %97
    %99 = vrot.lane.b32.xlu0 %v37, 96
    %v100 = vpop.permute.xlu0 %99
    %101 = vrot.lane.b32.xlu0 %v38, 96
    %v102 = vpop.permute.xlu0 %101
    %v119 = vadd.f32 %v23, %v72
    %v120 = vadd.f32 %v24, %v74
    %v121 = vadd.f32 %v25, %v76
    %v122 = vadd.f32 %v26, %v78
    %v123 = vadd.f32 %v27, %v80
    %v124 = vadd.f32 %v28, %v82
    %v125 = vadd.f32 %v29, %v84
    %v126 = vadd.f32 %v30, %v86
    %v127 = vadd.f32 %v31, %v88
    %v128 = vadd.f32 %v32, %v90
    %v129 = vadd.f32 %v33, %v92
    %v130 = vadd.f32 %v34, %v94
    %v131 = vadd.f32 %v35, %v96
    %v132 = vadd.f32 %v36, %v98
    %v133 = vadd.f32 %v37, %v100
    %v134 = vadd.f32 %v38, %v102
    %151 = vrot.lane.b32.xlu0 %v39, 96
    %v152 = vpop.permute.xlu0 %151
    %153 = vrot.lane.b32.xlu0 %v40, 96
    %v154 = vpop.permute.xlu0 %153
    %155 = vrot.lane.b32.xlu0 %v41, 96
    %v156 = vpop.permute.xlu0 %155
    %157 = vrot.lane.b32.xlu0 %v42, 96
    %v158 = vpop.permute.xlu0 %157
    %159 = vrot.lane.b32.xlu0 %v43, 96
    %v160 = vpop.permute.xlu0 %159
    %161 = vrot.lane.b32.xlu0 %v44, 96
    %v162 = vpop.permute.xlu0 %161
    %163 = vrot.lane.b32.xlu0 %v45, 96
    %v164 = vpop.permute.xlu0 %163
    %165 = vrot.lane.b32.xlu0 %v46, 96
    %v166 = vpop.permute.xlu0 %165
    %167 = vrot.lane.b32.xlu0 %v47, 96
    %v168 = vpop.permute.xlu0 %167
    %169 = vrot.lane.b32.xlu0 %v48, 96
    %v170 = vpop.permute.xlu0 %169
    %171 = vrot.lane.b32.xlu0 %v49, 96
    %v172 = vpop.permute.xlu0 %171
    %173 = vrot.lane.b32.xlu0 %v50, 96
    %v174 = vpop.permute.xlu0 %173
    %175 = vrot.lane.b32.xlu0 %v51, 96
    %v176 = vpop.permute.xlu0 %175
    %177 = vrot.lane.b32.xlu0 %v52, 96
    %v178 = vpop.permute.xlu0 %177
    %179 = vrot.lane.b32.xlu0 %v53, 96
    %v180 = vpop.permute.xlu0 %179
    %181 = vrot.lane.b32.xlu0 %v54, 96
    %v182 = vpop.permute.xlu0 %181
    %v199 = vadd.f32 %v39, %v152
    %v200 = vadd.f32 %v40, %v154
    %v201 = vadd.f32 %v41, %v156
    %v202 = vadd.f32 %v42, %v158
    %v203 = vadd.f32 %v43, %v160
    %v204 = vadd.f32 %v44, %v162
    %v205 = vadd.f32 %v45, %v164
    %v206 = vadd.f32 %v46, %v166
    %v207 = vadd.f32 %v47, %v168
    %v208 = vadd.f32 %v48, %v170
    %v209 = vadd.f32 %v49, %v172
    %v210 = vadd.f32 %v50, %v174
    %v211 = vadd.f32 %v51, %v176
    %v212 = vadd.f32 %v52, %v178
    %v213 = vadd.f32 %v53, %v180
    %v214 = vadd.f32 %v54, %v182
    %215 = vrot.lane.b32.xlu0 %v23, 64
    %v216 = vpop.permute.xlu0 %215
    %217 = vrot.lane.b32.xlu0 %v24, 64
    %v218 = vpop.permute.xlu0 %217
    %219 = vrot.lane.b32.xlu0 %v25, 64
    %v220 = vpop.permute.xlu0 %219
    %221 = vrot.lane.b32.xlu0 %v26, 64
    %v222 = vpop.permute.xlu0 %221
    %223 = vrot.lane.b32.xlu0 %v27, 64
    %v224 = vpop.permute.xlu0 %223
    %225 = vrot.lane.b32.xlu0 %v28, 64
    %v226 = vpop.permute.xlu0 %225
    %227 = vrot.lane.b32.xlu0 %v29, 64
    %v228 = vpop.permute.xlu0 %227
    %229 = vrot.lane.b32.xlu0 %v30, 64
    %v230 = vpop.permute.xlu0 %229
    %231 = vrot.lane.b32.xlu0 %v31, 64
    %v232 = vpop.permute.xlu0 %231
    %233 = vrot.lane.b32.xlu0 %v32, 64
    %v234 = vpop.permute.xlu0 %233
    %235 = vrot.lane.b32.xlu0 %v33, 64
    %v236 = vpop.permute.xlu0 %235
    %237 = vrot.lane.b32.xlu0 %v34, 64
    %v238 = vpop.permute.xlu0 %237
    %239 = vrot.lane.b32.xlu0 %v35, 64
    %v240 = vpop.permute.xlu0 %239
    %241 = vrot.lane.b32.xlu0 %v36, 64
    %v242 = vpop.permute.xlu0 %241
    %243 = vrot.lane.b32.xlu0 %v37, 64
    %v244 = vpop.permute.xlu0 %243
    %245 = vrot.lane.b32.xlu0 %v38, 64
    %v246 = vpop.permute.xlu0 %245
    %v263 = vadd.f32 %v119, %v216
    %v264 = vadd.f32 %v120, %v218
    %v265 = vadd.f32 %v121, %v220
    %v266 = vadd.f32 %v122, %v222
    %v267 = vadd.f32 %v123, %v224
    %v268 = vadd.f32 %v124, %v226
    %v269 = vadd.f32 %v125, %v228
    %v270 = vadd.f32 %v126, %v230
    %v271 = vadd.f32 %v127, %v232
    %v272 = vadd.f32 %v128, %v234
    %v273 = vadd.f32 %v129, %v236
    %v274 = vadd.f32 %v130, %v238
    %v275 = vadd.f32 %v131, %v240
    %v276 = vadd.f32 %v132, %v242
    %v277 = vadd.f32 %v133, %v244
    %v278 = vadd.f32 %v134, %v246
    %279 = vrot.lane.b32.xlu0 %v39, 64
    %v280 = vpop.permute.xlu0 %279
    %281 = vrot.lane.b32.xlu0 %v40, 64
    %v282 = vpop.permute.xlu0 %281
    %283 = vrot.lane.b32.xlu0 %v41, 64
    %v284 = vpop.permute.xlu0 %283
    %285 = vrot.lane.b32.xlu0 %v42, 64
    %v286 = vpop.permute.xlu0 %285
    %287 = vrot.lane.b32.xlu0 %v43, 64
    %v288 = vpop.permute.xlu0 %287
    %289 = vrot.lane.b32.xlu0 %v44, 64
    %v290 = vpop.permute.xlu0 %289
    %291 = vrot.lane.b32.xlu0 %v45, 64
    %v292 = vpop.permute.xlu0 %291
    %293 = vrot.lane.b32.xlu0 %v46, 64
    %v294 = vpop.permute.xlu0 %293
    %295 = vrot.lane.b32.xlu0 %v47, 64
    %v296 = vpop.permute.xlu0 %295
    %297 = vrot.lane.b32.xlu0 %v48, 64
    %v298 = vpop.permute.xlu0 %297
    %299 = vrot.lane.b32.xlu0 %v49, 64
    %v300 = vpop.permute.xlu0 %299
    %301 = vrot.lane.b32.xlu0 %v50, 64
    %v302 = vpop.permute.xlu0 %301
    %303 = vrot.lane.b32.xlu0 %v51, 64
    %v304 = vpop.permute.xlu0 %303
    %305 = vrot.lane.b32.xlu0 %v52, 64
    %v306 = vpop.permute.xlu0 %305
    %307 = vrot.lane.b32.xlu0 %v53, 64
    %v308 = vpop.permute.xlu0 %307
    %309 = vrot.lane.b32.xlu0 %v54, 64
    %v310 = vpop.permute.xlu0 %309
    %v327 = vadd.f32 %v199, %v280
    %v328 = vadd.f32 %v200, %v282
    %v329 = vadd.f32 %v201, %v284
    %v330 = vadd.f32 %v202, %v286
    %v331 = vadd.f32 %v203, %v288
    %v332 = vadd.f32 %v204, %v290
    %v333 = vadd.f32 %v205, %v292
    %v334 = vadd.f32 %v206, %v294
    %v335 = vadd.f32 %v207, %v296
    %v336 = vadd.f32 %v208, %v298
    %v337 = vadd.f32 %v209, %v300
    %v338 = vadd.f32 %v210, %v302
    %v339 = vadd.f32 %v211, %v304
    %v340 = vadd.f32 %v212, %v306
    %v341 = vadd.f32 %v213, %v308
    %v342 = vadd.f32 %v214, %v310
    %343 = vrot.lane.b32.xlu0 %v23, 32
    %v344 = vpop.permute.xlu0 %343
    %345 = vrot.lane.b32.xlu0 %v24, 32
    %v346 = vpop.permute.xlu0 %345
    %347 = vrot.lane.b32.xlu0 %v25, 32
    %v348 = vpop.permute.xlu0 %347
    %349 = vrot.lane.b32.xlu0 %v26, 32
    %v350 = vpop.permute.xlu0 %349
    %351 = vrot.lane.b32.xlu0 %v27, 32
    %v352 = vpop.permute.xlu0 %351
    %353 = vrot.lane.b32.xlu0 %v28, 32
    %v354 = vpop.permute.xlu0 %353
    %355 = vrot.lane.b32.xlu0 %v29, 32
    %v356 = vpop.permute.xlu0 %355
    %357 = vrot.lane.b32.xlu0 %v30, 32
    %v358 = vpop.permute.xlu0 %357
    %359 = vrot.lane.b32.xlu0 %v31, 32
    %v360 = vpop.permute.xlu0 %359
    %361 = vrot.lane.b32.xlu0 %v32, 32
    %v362 = vpop.permute.xlu0 %361
    %363 = vrot.lane.b32.xlu0 %v33, 32
    %v364 = vpop.permute.xlu0 %363
    %365 = vrot.lane.b32.xlu0 %v34, 32
    %v366 = vpop.permute.xlu0 %365
    %367 = vrot.lane.b32.xlu0 %v35, 32
    %v368 = vpop.permute.xlu0 %367
    %369 = vrot.lane.b32.xlu0 %v36, 32
    %v370 = vpop.permute.xlu0 %369
    %371 = vrot.lane.b32.xlu0 %v37, 32
    %v372 = vpop.permute.xlu0 %371
    %373 = vrot.lane.b32.xlu0 %v38, 32
    %v374 = vpop.permute.xlu0 %373
    %v391 = vadd.f32 %v263, %v344
    %v392 = vadd.f32 %v264, %v346
    %v393 = vadd.f32 %v265, %v348
    %v394 = vadd.f32 %v266, %v350
    %v395 = vadd.f32 %v267, %v352
    %v396 = vadd.f32 %v268, %v354
    %v397 = vadd.f32 %v269, %v356
    %v398 = vadd.f32 %v270, %v358
    %v399 = vadd.f32 %v271, %v360
    %v400 = vadd.f32 %v272, %v362
    %v401 = vadd.f32 %v273, %v364
    %v402 = vadd.f32 %v274, %v366
    %v403 = vadd.f32 %v275, %v368
    %v404 = vadd.f32 %v276, %v370
    %v405 = vadd.f32 %v277, %v372
    %v406 = vadd.f32 %v278, %v374
    %407 = vrot.lane.b32.xlu0 %v39, 32
    %v408 = vpop.permute.xlu0 %407
    %409 = vrot.lane.b32.xlu0 %v40, 32
    %v410 = vpop.permute.xlu0 %409
    %411 = vrot.lane.b32.xlu0 %v41, 32
    %v412 = vpop.permute.xlu0 %411
    %413 = vrot.lane.b32.xlu0 %v42, 32
    %v414 = vpop.permute.xlu0 %413
    %415 = vrot.lane.b32.xlu0 %v43, 32
    %v416 = vpop.permute.xlu0 %415
    %417 = vrot.lane.b32.xlu0 %v44, 32
    %v418 = vpop.permute.xlu0 %417
    %419 = vrot.lane.b32.xlu0 %v45, 32
    %v420 = vpop.permute.xlu0 %419
    %421 = vrot.lane.b32.xlu0 %v46, 32
    %v422 = vpop.permute.xlu0 %421
    %423 = vrot.lane.b32.xlu0 %v47, 32
    %v424 = vpop.permute.xlu0 %423
    %425 = vrot.lane.b32.xlu0 %v48, 32
    %v426 = vpop.permute.xlu0 %425
    %427 = vrot.lane.b32.xlu0 %v49, 32
    %v428 = vpop.permute.xlu0 %427
    %429 = vrot.lane.b32.xlu0 %v50, 32
    %v430 = vpop.permute.xlu0 %429
    %431 = vrot.lane.b32.xlu0 %v51, 32
    %v432 = vpop.permute.xlu0 %431
    %433 = vrot.lane.b32.xlu0 %v52, 32
    %v434 = vpop.permute.xlu0 %433
    %435 = vrot.lane.b32.xlu0 %v53, 32
    %v436 = vpop.permute.xlu0 %435
    %437 = vrot.lane.b32.xlu0 %v54, 32
    %v438 = vpop.permute.xlu0 %437
    %v455 = vadd.f32 %v327, %v408
    %v456 = vadd.f32 %v328, %v410
    %v457 = vadd.f32 %v329, %v412
    %v458 = vadd.f32 %v330, %v414
    %v459 = vadd.f32 %v331, %v416
    %v460 = vadd.f32 %v332, %v418
    %v461 = vadd.f32 %v333, %v420
    %v462 = vadd.f32 %v334, %v422
    %v463 = vadd.f32 %v335, %v424
    %v464 = vadd.f32 %v336, %v426
    %v465 = vadd.f32 %v337, %v428
    %v466 = vadd.f32 %v338, %v430
    %v467 = vadd.f32 %v339, %v432
    %v468 = vadd.f32 %v340, %v434
    %v469 = vadd.f32 %v341, %v436
    %v470 = vadd.f32 %v342, %v438
    %v471 = vmul.f32 %v391, %v391
    %v472 = vmul.f32 %v392, %v392
    %v473 = vmul.f32 %v393, %v393
    %v474 = vmul.f32 %v394, %v394
    %v475 = vmul.f32 %v395, %v395
    %v476 = vmul.f32 %v396, %v396
    %v477 = vmul.f32 %v397, %v397
    %v478 = vmul.f32 %v398, %v398
    %v479 = vmul.f32 %v399, %v399
    %v480 = vmul.f32 %v400, %v400
    %v481 = vmul.f32 %v401, %v401
    %v482 = vmul.f32 %v402, %v402
    %v483 = vmul.f32 %v403, %v403
    %v484 = vmul.f32 %v404, %v404
    %v485 = vmul.f32 %v405, %v405
    %v486 = vmul.f32 %v406, %v406
    %v487 = vsub.f32 %v471, %v455
    %v488 = vsub.f32 %v472, %v456
    %v489 = vsub.f32 %v473, %v457
    %v490 = vsub.f32 %v474, %v458
    %v491 = vsub.f32 %v475, %v459
    %v492 = vsub.f32 %v476, %v460
    %v493 = vsub.f32 %v477, %v461
    %v494 = vsub.f32 %v478, %v462
    %v495 = vsub.f32 %v479, %v463
    %v496 = vsub.f32 %v480, %v464
    %v497 = vsub.f32 %v481, %v465
    %v498 = vsub.f32 %v482, %v466
    %v499 = vsub.f32 %v483, %v467
    %v500 = vsub.f32 %v484, %v468
    %v501 = vsub.f32 %v485, %v469
    %v502 = vsub.f32 %v486, %v470
    %vm503 = vcmask 261120
    %v504 = vsel %vm503, %v487, 0.0
    %505 = vadd.xlane.f32.xlu0 %v504
    %v506 = vpop.xlane.xlu0 %505
    %v507 = vsel %vm503, %v488, 0.0
    %508 = vadd.xlane.f32.xlu0 %v507
    %v509 = vpop.xlane.xlu0 %508
    %v510 = vsel %vm503, %v489, 0.0
    %511 = vadd.xlane.f32.xlu0 %v510
    %v512 = vpop.xlane.xlu0 %511
    %v513 = vsel %vm503, %v490, 0.0
    %514 = vadd.xlane.f32.xlu0 %v513
    %v515 = vpop.xlane.xlu0 %514
    %v516 = vsel %vm503, %v491, 0.0
    %517 = vadd.xlane.f32.xlu0 %v516
    %v518 = vpop.xlane.xlu0 %517
    %v519 = vsel %vm503, %v492, 0.0
    %520 = vadd.xlane.f32.xlu0 %v519
    %v521 = vpop.xlane.xlu0 %520
    %v522 = vsel %vm503, %v493, 0.0
    %523 = vadd.xlane.f32.xlu0 %v522
    %v524 = vpop.xlane.xlu0 %523
    %v525 = vsel %vm503, %v494, 0.0
    %526 = vadd.xlane.f32.xlu0 %v525
    %v527 = vpop.xlane.xlu0 %526
    %v528 = vsel %vm503, %v495, 0.0
    %529 = vadd.xlane.f32.xlu0 %v528
    %v530 = vpop.xlane.xlu0 %529
    %v531 = vsel %vm503, %v496, 0.0
    %532 = vadd.xlane.f32.xlu0 %v531
    %v533 = vpop.xlane.xlu0 %532
    %v534 = vsel %vm503, %v497, 0.0
    %535 = vadd.xlane.f32.xlu0 %v534
    %v536 = vpop.xlane.xlu0 %535
    %v537 = vsel %vm503, %v498, 0.0
    %538 = vadd.xlane.f32.xlu0 %v537
    %v539 = vpop.xlane.xlu0 %538
    %v540 = vsel %vm503, %v499, 0.0
    %541 = vadd.xlane.f32.xlu0 %v540
    %v542 = vpop.xlane.xlu0 %541
    %v543 = vsel %vm503, %v500, 0.0
    %544 = vadd.xlane.f32.xlu0 %v543
    %v545 = vpop.xlane.xlu0 %544
    %v546 = vsel %vm503, %v501, 0.0
    %547 = vadd.xlane.f32.xlu0 %v546
    %v548 = vpop.xlane.xlu0 %547
    %v549 = vsel %vm503, %v502, 0.0
    %550 = vadd.xlane.f32.xlu0 %v549
    %v551 = vpop.xlane.xlu0 %550
    %v552 = vmul.f32 %v506, 0.5
    %v553 = vmul.f32 %v509, 0.5
    %v554 = vmul.f32 %v512, 0.5
    %v555 = vmul.f32 %v515, 0.5
    %v556 = vmul.f32 %v518, 0.5
    %v557 = vmul.f32 %v521, 0.5
    %v558 = vmul.f32 %v524, 0.5
    %v559 = vmul.f32 %v527, 0.5
    %v560 = vmul.f32 %v530, 0.5
    %v561 = vmul.f32 %v533, 0.5
    %v562 = vmul.f32 %v536, 0.5
    %v563 = vmul.f32 %v539, 0.5
    %v564 = vmul.f32 %v542, 0.5
    %v565 = vmul.f32 %v545, 0.5
    %v566 = vmul.f32 %v548, 0.5
    %v567 = vmul.f32 %v551, 0.5
    %v584 = vlaneseq
    %v585 = vand.u32 %v584, 127
    %v586 = vlaneseq
    %v587 = vshrl.u32 %v586, 7
    %v588 = vsub.s32 %v585, %v587
    %v589 = vrot.slane %v552, %v588
    %v590 = vadd.s32 %v585, 4294967288
    %v591 = vlaneseq
    %v592 = vshrl.u32 %v591, 7
    %v593 = vsub.s32 %v590, %v592
    %v594 = vrot.slane %v553, %v593
    %vm595 = vcmask 130112
    %v596 = vsel %vm595, %v594, %v589
    %v597 = vadd.s32 %v585, 4294967280
    %v598 = vlaneseq
    %v599 = vshrl.u32 %v598, 7
    %v600 = vsub.s32 %v597, %v599
    %v601 = vrot.slane %v554, %v600
    %vm602 = vcmask 195712
    %v603 = vsel %vm602, %v601, %v596
    %v604 = vadd.s32 %v585, 4294967272
    %v605 = vlaneseq
    %v606 = vshrl.u32 %v605, 7
    %v607 = vsub.s32 %v604, %v606
    %v608 = vrot.slane %v555, %v607
    %vm609 = vcmask 261312
    %v610 = vsel %vm609, %v608, %v603
    %v611 = vadd.s32 %v585, 4294967264
    %v612 = vlaneseq
    %v613 = vshrl.u32 %v612, 7
    %v614 = vsub.s32 %v611, %v613
    %v615 = vrot.slane %v556, %v614
    %vm616 = vcmask 326912
    %v617 = vsel %vm616, %v615, %v610
    %v618 = vadd.s32 %v585, 4294967256
    %v619 = vlaneseq
    %v620 = vshrl.u32 %v619, 7
    %v621 = vsub.s32 %v618, %v620
    %v622 = vrot.slane %v557, %v621
    %vm623 = vcmask 392512
    %v624 = vsel %vm623, %v622, %v617
    %v625 = vadd.s32 %v585, 4294967248
    %v626 = vlaneseq
    %v627 = vshrl.u32 %v626, 7
    %v628 = vsub.s32 %v625, %v627
    %v629 = vrot.slane %v558, %v628
    %vm630 = vcmask 458112
    %v631 = vsel %vm630, %v629, %v624
    %v632 = vadd.s32 %v585, 4294967240
    %v633 = vlaneseq
    %v634 = vshrl.u32 %v633, 7
    %v635 = vsub.s32 %v632, %v634
    %v636 = vrot.slane %v559, %v635
    %vm637 = vcmask 523712
    %v638 = vsel %vm637, %v636, %v631
    %v639 = vadd.s32 %v585, 4294967232
    %v640 = vlaneseq
    %v641 = vshrl.u32 %v640, 7
    %v642 = vsub.s32 %v639, %v641
    %v643 = vrot.slane %v560, %v642
    %vm644 = vcmask 589312
    %v645 = vsel %vm644, %v643, %v638
    %v646 = vadd.s32 %v585, 4294967224
    %v647 = vlaneseq
    %v648 = vshrl.u32 %v647, 7
    %v649 = vsub.s32 %v646, %v648
    %v650 = vrot.slane %v561, %v649
    %vm651 = vcmask 654912
    %v652 = vsel %vm651, %v650, %v645
    %v653 = vadd.s32 %v585, 4294967216
    %v654 = vlaneseq
    %v655 = vshrl.u32 %v654, 7
    %v656 = vsub.s32 %v653, %v655
    %v657 = vrot.slane %v562, %v656
    %vm658 = vcmask 720512
    %v659 = vsel %vm658, %v657, %v652
    %v660 = vadd.s32 %v585, 4294967208
    %v661 = vlaneseq
    %v662 = vshrl.u32 %v661, 7
    %v663 = vsub.s32 %v660, %v662
    %v664 = vrot.slane %v563, %v663
    %vm665 = vcmask 786112
    %v666 = vsel %vm665, %v664, %v659
    %v667 = vadd.s32 %v585, 4294967200
    %v668 = vlaneseq
    %v669 = vshrl.u32 %v668, 7
    %v670 = vsub.s32 %v667, %v669
    %v671 = vrot.slane %v564, %v670
    %vm672 = vcmask 851712
    %v673 = vsel %vm672, %v671, %v666
    %v674 = vadd.s32 %v585, 4294967192
    %v675 = vlaneseq
    %v676 = vshrl.u32 %v675, 7
    %v677 = vsub.s32 %v674, %v676
    %v678 = vrot.slane %v565, %v677
    %vm679 = vcmask 917312
    %v680 = vsel %vm679, %v678, %v673
    %v681 = vadd.s32 %v585, 4294967184
    %v682 = vlaneseq
    %v683 = vshrl.u32 %v682, 7
    %v684 = vsub.s32 %v681, %v683
    %v685 = vrot.slane %v566, %v684
    %vm686 = vcmask 982912
    %v687 = vsel %vm686, %v685, %v680
    %v688 = vadd.s32 %v585, 4294967176
    %v689 = vlaneseq
    %v690 = vshrl.u32 %v689, 7
    %v691 = vsub.s32 %v688, %v690
    %v692 = vrot.slane %v567, %v691
    %vm693 = vcmask 1048512
    %v694 = vsel %vm693, %v692, %v687
    %696 = vst [vmem:[#allocation5] sm:$0x1] %v694
    // Predicated region
    $region10: #{tpu_custom_call.1} parent=1 // pred_check
      _
    $region11: #{tpu_custom_call.1} parent=1 // pred_check_branch
      %698 = sbr.rel (0) target = $region13
    $region12: #{tpu_custom_call.1} parent=1 // pred_region
      %s700 = ssub.s32 16, 16
      %701 = vsyncadd [#allocation4], %s700
      %s703 = sshll.u32 [#allocation5], 4
      %s704 = int_to_ptr.vmem [resolvable:$true] %s703
      %706 = dma.vmem_to_hbm [thread:$0]  %s704, 16, %s1, [#allocation4]
    $region13: #{tpu_custom_call.1} parent=1 // pred_fallthru
      _
    // Predicated region
    $region14: #{tpu_custom_call.1} parent=1 // pred_check
      _
    $region15: #{tpu_custom_call.1} parent=1 // pred_check_branch
      %708 = sbr.rel (0) target = $region17
    $region16: #{tpu_custom_call.1} parent=1 // pred_region
      %709 = dma.done [#allocation4], 16
    $region17: #{tpu_custom_call.1} parent=1 // pred_fallthru
      _
    %710 = vsyncpa [#allocation3], 1
    %711 = vsyncpa [#allocation4], 1

</llo_original>
